<compile_context>
chip_gen: v5e
topology: v5e:2x2
jax: 0.10.0
libtpu: 0.0.40
codegen_flags: <defaults>
</compile_context>

<pallas_src>
import jax
import jax.numpy as jnp
from jax.experimental import pallas as pl
from jax.experimental.pallas import tpu as pltpu


# ----------------------------------------------------------------------------
# Kernel body: y = relu(relu(x@W1+b1)@W2+b2)@W3+b3, f32 accumulation on MXU.
# ----------------------------------------------------------------------------
def _mlp_kernel(x_ref, w1_ref, b1_ref, w2_ref, b2_ref, w3_ref, b3_ref, o_ref):
    h = jnp.dot(x_ref[...], w1_ref[...], preferred_element_type=jnp.float32)
    h = jnp.maximum(h + b1_ref[...], 0.0)
    h = jnp.dot(h, w2_ref[...], preferred_element_type=jnp.float32)
    h = jnp.maximum(h + b2_ref[...], 0.0)
    y = jnp.dot(h, w3_ref[...], preferred_element_type=jnp.float32)
    o_ref[...] = (y + b3_ref[...]).astype(o_ref.dtype)


def _round_up(x, m):
    return ((x + m - 1) // m) * m


def _num_tensorcores():
    """2 grid steps only on 2-TC chips (v7x); single step elsewhere."""
    try:
        kind = jax.devices()[0].device_kind.lower()
    except Exception:
        return 1
    return 2 if ("v7" in kind or "7x" in kind) else 1


def _pad_2d(a, rows, cols):
    r, c = a.shape
    if r == rows and c == cols:
        return a
    return jnp.pad(a, ((0, rows - r), (0, cols - c)))


# ----------------------------------------------------------------------------
# One-time parameter preparation (hoisted out of the forward pass).
# ----------------------------------------------------------------------------
def prepare_params(params, lane=128):
    """Pad hidden dimensions to the 128-lane width once, keep f32.

    params: [(W, b)] with W of shape (in, out) (already W_torch.T) and b (1, out).
    The input dim of the first layer and the output dim of the last layer are
    kept at their true sizes (they equal the full array dims of x / output).
    Zero padding is a functional no-op for the MLP forward pass.
    """
    n = len(params)
    prepared = []
    for i, (w, b) in enumerate(params):
        in_d, out_d = w.shape
        in_p = in_d if i == 0 else _round_up(in_d, lane)
        out_p = out_d if i == n - 1 else _round_up(out_d, lane)
        w_p = _pad_2d(jnp.asarray(w, jnp.float32), in_p, out_p)
        b_p = _pad_2d(jnp.asarray(b, jnp.float32).reshape(1, -1), 1, out_p)
        prepared.append((w_p, b_p))
    return prepared


# ----------------------------------------------------------------------------
# Forward pass
# ----------------------------------------------------------------------------
def mlp_forward(x, prepared_params, *, num_steps=None, max_tile=2048):
    """Fused MLP forward.

    x:               (B, D0) float32
    prepared_params: output of prepare_params (hidden dims padded to 128).
    """
    (w1, b1), (w2, b2), (w3, b3) = prepared_params
    B, D0 = x.shape
    assert D0 == w1.shape[0], "input feature dim mismatch"
    D_out = w3.shape[1]

    # --- grid sizing: 1 step on v5e/v6e, 2 parallel steps on v7x -------------
    if num_steps is None:
        num_steps = _num_tensorcores()
    num_steps = max(1, min(num_steps, pl.cdiv(B, 8)))

    B_pad = _round_up(B, 8 * num_steps)
    tile_m = B_pad // num_steps
    if tile_m > max_tile:                      # cap per-step footprint for huge B
        tile_m = max_tile
        B_pad = _round_up(B, tile_m)

    x_in = x
    if B_pad != B:                             # only ragged batches pay for a pad
        x_in = jnp.pad(x, ((0, B_pad - B), (0, 0)))

    grid = (B_pad // tile_m,)

    def resident(shape):
        # whole-array block, constant index -> loaded once, never re-DMA'd
        return pl.BlockSpec(shape, lambda i: (0, 0))

    flops = 2 * B_pad * (w1.shape[0] * w1.shape[1]
                         + w2.shape[0] * w2.shape[1]
                         + w3.shape[0] * w3.shape[1])
    bytes_accessed = 4 * (x_in.size + w1.size + b1.size + w2.size + b2.size
                          + w3.size + b3.size + B_pad * D_out)

    out = pl.pallas_call(
        _mlp_kernel,
        out_shape=jax.ShapeDtypeStruct((B_pad, D_out), jnp.float32),
        grid_spec=pl.GridSpec(
            grid=grid,
            in_specs=[
                pl.BlockSpec((tile_m, D0), lambda i: (i, 0)),   # x batch tile
                resident(w1.shape), resident(b1.shape),
                resident(w2.shape), resident(b2.shape),
                resident(w3.shape), resident(b3.shape),
            ],
            out_specs=pl.BlockSpec((tile_m, D_out), lambda i: (i, 0)),
        ),
        compiler_params=pltpu.CompilerParams(
            dimension_semantics=("parallel",)),
        cost_estimate=pl.CostEstimate(
            flops=int(flops), transcendentals=0,
            bytes_accessed=int(bytes_accessed)),
    )(x_in, w1, b1, w2, b2, w3, b3)

    return out if B_pad == B else out[:B]


# ----------------------------------------------------------------------------
# Init + reference
# ----------------------------------------------------------------------------
def init_params(layer_sizes, key):
    """Deterministic PyTorch-style init: U(-1/sqrt(fan_in), 1/sqrt(fan_in))."""
    params = []
    for i in range(len(layer_sizes) - 1):
        fan_in, fan_out = layer_sizes[i], layer_sizes[i + 1]
        key, kw, kb = jax.random.split(key, 3)
        bound = 1.0 / jnp.sqrt(fan_in)
        # stored as (in, out) == W_torch.T
        w = jax.random.uniform(kw, (fan_in, fan_out), jnp.float32, -bound, bound)
        b = jax.random.uniform(kb, (1, fan_out), jnp.float32, -bound, bound)
        params.append((w, b))
    return params


def reference_forward(x, params):
    (w1, b1), (w2, b2), (w3, b3) = params
    h = jnp.maximum(x @ w1 + b1, 0.0)
    h = jnp.maximum(h @ w2 + b2, 0.0)
    return h @ w3 + b3


if __name__ == "__main__":
    # Module configuration: layer_sizes = [32, 64, 64, 16]
    # -> Linear(32,64) + ReLU + Linear(64,64) + ReLU + Linear(64,16)
    layer_sizes = [32, 64, 64, 16]

    key = jax.random.PRNGKey(0)
    key, kx = jax.random.split(key)
    params = init_params(layer_sizes, key)
    prepared = jax.tree.map(jax.block_until_ready, prepare_params(params))  # one-time prep

    # Main case: tile-aligned batch (no padding, no slicing in the wrapper).
    batch = 256
    x = jax.random.normal(kx, (batch, layer_sizes[0]), jnp.float32)
    out = jax.block_until_ready(mlp_forward(x, prepared))
    ref = reference_forward(x, params)
    assert out.shape == (batch, layer_sizes[-1])
    # loose tolerance to cover MXU bf16-pass behavior of f32 dots across backends
    assert jnp.allclose(out, ref, atol=2e-2, rtol=2e-2), "mismatch vs reference"

    # Ragged-batch case: exercises tail padding + row slice.
    batch2 = 50
    x2 = jax.random.normal(jax.random.PRNGKey(1), (batch2, layer_sizes[0]), jnp.float32)
    out2 = jax.block_until_ready(mlp_forward(x2, prepared))
    ref2 = reference_forward(x2, params)
    assert out2.shape == (batch2, layer_sizes[-1])
    assert jnp.allclose(out2, ref2, atol=2e-2, rtol=2e-2), "mismatch vs reference (ragged)"

    print("KERNEL_OK")
</pallas_src>

<mosaic_0001>
module attributes {stable_mosaic.version = 11 : i64} {
  func.func @_mlp_kernel(%arg0: i32, %arg1: memref<256x32xf32, #tpu.memory_space<vmem>>, %arg2: memref<32x128xf32, #tpu.memory_space<vmem>>, %arg3: memref<1x128xf32, #tpu.memory_space<vmem>>, %arg4: memref<128x128xf32, #tpu.memory_space<vmem>>, %arg5: memref<1x128xf32, #tpu.memory_space<vmem>>, %arg6: memref<128x16xf32, #tpu.memory_space<vmem>>, %arg7: memref<1x16xf32, #tpu.memory_space<vmem>>, %arg8: memref<256x16xf32, #tpu.memory_space<vmem>>) attributes {dimension_semantics = [#tpu.dimension_semantics<parallel>], iteration_bounds = array<i64: 1>, scalar_prefetch = 0 : i64, scratch_operands = 0 : i64, tpu.core_type = #tpu.core_type<tc>, window_params = [{transform_indices = @transform_0, window_bounds = array<i64: 256, 32>}, {pipeline_mode = #tpu.pipeline_mode<synchronous>, transform_indices = @transform_1, window_bounds = array<i64: 32, 128>}, {pipeline_mode = #tpu.pipeline_mode<synchronous>, transform_indices = @transform_2, window_bounds = array<i64: 1, 128>}, {pipeline_mode = #tpu.pipeline_mode<synchronous>, transform_indices = @transform_3, window_bounds = array<i64: 128, 128>}, {pipeline_mode = #tpu.pipeline_mode<synchronous>, transform_indices = @transform_4, window_bounds = array<i64: 1, 128>}, {pipeline_mode = #tpu.pipeline_mode<synchronous>, transform_indices = @transform_5, window_bounds = array<i64: 128, 16>}, {pipeline_mode = #tpu.pipeline_mode<synchronous>, transform_indices = @transform_6, window_bounds = array<i64: 1, 16>}, {transform_indices = @transform_7, window_bounds = array<i64: 256, 16>}]} {
    %c0 = arith.constant 0 : index
    %c0_0 = arith.constant 0 : index
    %0 = vector.load %arg1[%c0, %c0_0] : memref<256x32xf32, #tpu.memory_space<vmem>>, vector<256x32xf32>
    %c0_1 = arith.constant 0 : index
    %c0_2 = arith.constant 0 : index
    %1 = vector.load %arg2[%c0_1, %c0_2] : memref<32x128xf32, #tpu.memory_space<vmem>>, vector<32x128xf32>
    %cst = arith.constant dense<0.000000e+00> : vector<256x128xf32>
    %2 = tpu.matmul %0, %1, %cst {dimension_numbers = #tpu.dot_dimension_numbers<[1], [0], [0], [1], [0, 0, 1, 1], [], []>} : vector<256x32xf32>, vector<32x128xf32>, vector<256x128xf32> -> vector<256x128xf32>
    %c0_3 = arith.constant 0 : index
    %c0_4 = arith.constant 0 : index
    %3 = vector.load %arg3[%c0_3, %c0_4] : memref<1x128xf32, #tpu.memory_space<vmem>>, vector<1x128xf32>
    %4 = vector.broadcast %3 : vector<1x128xf32> to vector<256x128xf32>
    %5 = arith.addf %2, %4 : vector<256x128xf32>
    %cst_5 = arith.constant 0.000000e+00 : f32
    %6 = vector.broadcast %cst_5 : f32 to vector<256x128xf32>
    %7 = arith.maximumf %5, %6 : vector<256x128xf32>
    %c0_6 = arith.constant 0 : index
    %c0_7 = arith.constant 0 : index
    %8 = vector.load %arg4[%c0_6, %c0_7] : memref<128x128xf32, #tpu.memory_space<vmem>>, vector<128x128xf32>
    %cst_8 = arith.constant dense<0.000000e+00> : vector<256x128xf32>
    %9 = tpu.matmul %7, %8, %cst_8 {dimension_numbers = #tpu.dot_dimension_numbers<[1], [0], [0], [1], [0, 0, 1, 1], [], []>} : vector<256x128xf32>, vector<128x128xf32>, vector<256x128xf32> -> vector<256x128xf32>
    %c0_9 = arith.constant 0 : index
    %c0_10 = arith.constant 0 : index
    %10 = vector.load %arg5[%c0_9, %c0_10] : memref<1x128xf32, #tpu.memory_space<vmem>>, vector<1x128xf32>
    %11 = vector.broadcast %10 : vector<1x128xf32> to vector<256x128xf32>
    %12 = arith.addf %9, %11 : vector<256x128xf32>
    %cst_11 = arith.constant 0.000000e+00 : f32
    %13 = vector.broadcast %cst_11 : f32 to vector<256x128xf32>
    %14 = arith.maximumf %12, %13 : vector<256x128xf32>
    %c0_12 = arith.constant 0 : index
    %c0_13 = arith.constant 0 : index
    %15 = vector.load %arg6[%c0_12, %c0_13] : memref<128x16xf32, #tpu.memory_space<vmem>>, vector<128x16xf32>
    %cst_14 = arith.constant dense<0.000000e+00> : vector<256x16xf32>
    %16 = tpu.matmul %14, %15, %cst_14 {dimension_numbers = #tpu.dot_dimension_numbers<[1], [0], [0], [1], [0, 0, 1, 1], [], []>} : vector<256x128xf32>, vector<128x16xf32>, vector<256x16xf32> -> vector<256x16xf32>
    %c0_15 = arith.constant 0 : index
    %c0_16 = arith.constant 0 : index
    %17 = vector.load %arg7[%c0_15, %c0_16] : memref<1x16xf32, #tpu.memory_space<vmem>>, vector<1x16xf32>
    %18 = vector.broadcast %17 : vector<1x16xf32> to vector<256x16xf32>
    %19 = arith.addf %16, %18 : vector<256x16xf32>
    %c0_17 = arith.constant 0 : index
    %c0_18 = arith.constant 0 : index
    %20 = vector.load %arg8[%c0_17, %c0_18] : memref<256x16xf32, #tpu.memory_space<vmem>>, vector<256x16xf32>
    tpu.vector_store %arg8[%c0_17, %c0_18], %19 {strides = array<i32>} : memref<256x16xf32, #tpu.memory_space<vmem>>, vector<256x16xf32>,
    return
  }
  func.func @transform_0(%arg0: i32) -> (i32, i32) {
    %c0_i32 = arith.constant 0 : i32
    %c0_i32_0 = arith.constant 0 : i32
    return %arg0, %c0_i32 : i32, i32
  }
  func.func @transform_1(%arg0: i32) -> (i32, i32) {
    %c0_i32 = arith.constant 0 : i32
    %c0_i32_0 = arith.constant 0 : i32
    %c0_i32_1 = arith.constant 0 : i32
    return %c0_i32, %c0_i32_0 : i32, i32
  }
  func.func @transform_2(%arg0: i32) -> (i32, i32) {
    %c0_i32 = arith.constant 0 : i32
    %c0_i32_0 = arith.constant 0 : i32
    %c0_i32_1 = arith.constant 0 : i32
    return %c0_i32, %c0_i32_0 : i32, i32
  }
  func.func @transform_3(%arg0: i32) -> (i32, i32) {
    %c0_i32 = arith.constant 0 : i32
    %c0_i32_0 = arith.constant 0 : i32
    %c0_i32_1 = arith.constant 0 : i32
    return %c0_i32, %c0_i32_0 : i32, i32
  }
  func.func @transform_4(%arg0: i32) -> (i32, i32) {
    %c0_i32 = arith.constant 0 : i32
    %c0_i32_0 = arith.constant 0 : i32
    %c0_i32_1 = arith.constant 0 : i32
    return %c0_i32, %c0_i32_0 : i32, i32
  }
  func.func @transform_5(%arg0: i32) -> (i32, i32) {
    %c0_i32 = arith.constant 0 : i32
    %c0_i32_0 = arith.constant 0 : i32
    %c0_i32_1 = arith.constant 0 : i32
    return %c0_i32, %c0_i32_0 : i32, i32
  }
  func.func @transform_6(%arg0: i32) -> (i32, i32) {
    %c0_i32 = arith.constant 0 : i32
    %c0_i32_0 = arith.constant 0 : i32
    %c0_i32_1 = arith.constant 0 : i32
    return %c0_i32, %c0_i32_0 : i32, i32
  }
  func.func @transform_7(%arg0: i32) -> (i32, i32) {
    %c0_i32 = arith.constant 0 : i32
    %c0_i32_0 = arith.constant 0 : i32
    return %arg0, %c0_i32 : i32, i32
  }
}

</mosaic_0001>

<llo_original>
// kernel: tpu_custom_call.1
$region0: #{tpu_custom_call.1}
  #allocation0 [shape = 'u32[]', space=smem, size = 0x4, offset = 0x4, fixed_abs, tag = 'smem constant byte address 0x4 - core index']
  #allocation1 [shape = 'u32[72,128]{1,0:T(1,128)}', space=vmem, size = 0x9000, scoped, tag = 'internal scratch']
  %s0 = inlined_call_operand.vmem [shape: f32[256,32], index: 0, kind: input, shape index: {}]
  %s1 = inlined_call_operand.vmem [shape: f32[32,128], index: 1, kind: input, shape index: {}]
  %s2 = inlined_call_operand.vmem [shape: f32[1,128], index: 2, kind: input, shape index: {}]
  %s3 = inlined_call_operand.vmem [shape: f32[128,128], index: 3, kind: input, shape index: {}]
  %s4 = inlined_call_operand.vmem [shape: f32[1,128], index: 4, kind: input, shape index: {}]
  %s5 = inlined_call_operand.vmem [shape: f32[128,16], index: 5, kind: input, shape index: {}]
  %s6 = inlined_call_operand.vmem [shape: f32[1,16], index: 6, kind: input, shape index: {}]
  %s7 = inlined_call_operand.vmem [shape: f32[256,16], index: 7, kind: output, shape index: {}]
  %s8 = sld [smem:[#allocation0]]
  $region38: #{tpu_custom_call.1} parent=0
    _
  %s10 = ssub.s32 1, %s8
  %s11 = scalar_select 0, %s10, %s8
  // Predicated region
  $region2: #{tpu_custom_call.1} parent=0 // pred_check
    _
  $region3: #{tpu_custom_call.1} parent=0 // pred_check_branch
    %13 = sbr.rel (0) target = $region5
  $region4: #{tpu_custom_call.1} parent=0 // pred_region
    _
  $region5: #{tpu_custom_call.1} parent=0 // pred_fallthru
    _
  // Predicated region
  $region6: #{tpu_custom_call.1} parent=0 // pred_check
    _
  $region7: #{tpu_custom_call.1} parent=0 // pred_check_branch
    %15 = sbr.rel (0) target = $region9
  $region8: #{tpu_custom_call.1} parent=0 // pred_region
    _
  $region9: #{tpu_custom_call.1} parent=0 // pred_fallthru
    _
  // Predicated region
  $region10: #{tpu_custom_call.1} parent=0 // pred_check
    _
  $region11: #{tpu_custom_call.1} parent=0 // pred_check_branch
    %17 = sbr.rel (0) target = $region13
  $region12: #{tpu_custom_call.1} parent=0 // pred_region
    _
  $region13: #{tpu_custom_call.1} parent=0 // pred_fallthru
    _
  // Predicated region
  $region14: #{tpu_custom_call.1} parent=0 // pred_check
    _
  $region15: #{tpu_custom_call.1} parent=0 // pred_check_branch
    %19 = sbr.rel (0) target = $region17
  $region16: #{tpu_custom_call.1} parent=0 // pred_region
    _
  $region17: #{tpu_custom_call.1} parent=0 // pred_fallthru
    _
  // Predicated region
  $region18: #{tpu_custom_call.1} parent=0 // pred_check
    _
  $region19: #{tpu_custom_call.1} parent=0 // pred_check_branch
    %21 = sbr.rel (0) target = $region21
  $region20: #{tpu_custom_call.1} parent=0 // pred_region
    _
  $region21: #{tpu_custom_call.1} parent=0 // pred_fallthru
    _
  // Predicated region
  $region22: #{tpu_custom_call.1} parent=0 // pred_check
    _
  $region23: #{tpu_custom_call.1} parent=0 // pred_check_branch
    %23 = sbr.rel (0) target = $region25
  $region24: #{tpu_custom_call.1} parent=0 // pred_region
    _
  $region25: #{tpu_custom_call.1} parent=0 // pred_fallthru
    _
  // Predicated region
  $region26: #{tpu_custom_call.1} parent=0 // pred_check
    _
  $region27: #{tpu_custom_call.1} parent=0 // pred_check_branch
    %25 = sbr.rel (0) target = $region29
  $region28: #{tpu_custom_call.1} parent=0 // pred_region
    _
  $region29: #{tpu_custom_call.1} parent=0 // pred_fallthru
    _
  %v26 = vld [vmem:[%s0] sm:$0xff]
  %v27 = vld [vmem:[%s0 + $0x8] sm:$0xff]
  %v28 = vld [vmem:[%s0 + $0x10] sm:$0xff]
  %v29 = vld [vmem:[%s0 + $0x18] sm:$0xff]
  %v30 = vld [vmem:[%s0 + $0x20] sm:$0xff]
  %v31 = vld [vmem:[%s0 + $0x28] sm:$0xff]
  %v32 = vld [vmem:[%s0 + $0x30] sm:$0xff]
  %v33 = vld [vmem:[%s0 + $0x38] sm:$0xff]
  %v34 = vld [vmem:[%s0 + $0x40] sm:$0xff]
  %v35 = vld [vmem:[%s0 + $0x48] sm:$0xff]
  %v36 = vld [vmem:[%s0 + $0x50] sm:$0xff]
  %v37 = vld [vmem:[%s0 + $0x58] sm:$0xff]
  %v38 = vld [vmem:[%s0 + $0x60] sm:$0xff]
  %v39 = vld [vmem:[%s0 + $0x68] sm:$0xff]
  %v40 = vld [vmem:[%s0 + $0x70] sm:$0xff]
  %v41 = vld [vmem:[%s0 + $0x78] sm:$0xff]
  %v42 = vld [vmem:[%s0 + $0x80] sm:$0xff]
  %v43 = vld [vmem:[%s0 + $0x88] sm:$0xff]
  %v44 = vld [vmem:[%s0 + $0x90] sm:$0xff]
  %v45 = vld [vmem:[%s0 + $0x98] sm:$0xff]
  %v46 = vld [vmem:[%s0 + $0xa0] sm:$0xff]
  %v47 = vld [vmem:[%s0 + $0xa8] sm:$0xff]
  %v48 = vld [vmem:[%s0 + $0xb0] sm:$0xff]
  %v49 = vld [vmem:[%s0 + $0xb8] sm:$0xff]
  %v50 = vld [vmem:[%s0 + $0xc0] sm:$0xff]
  %v51 = vld [vmem:[%s0 + $0xc8] sm:$0xff]
  %v52 = vld [vmem:[%s0 + $0xd0] sm:$0xff]
  %v53 = vld [vmem:[%s0 + $0xd8] sm:$0xff]
  %v54 = vld [vmem:[%s0 + $0xe0] sm:$0xff]
  %v55 = vld [vmem:[%s0 + $0xe8] sm:$0xff]
  %v56 = vld [vmem:[%s0 + $0xf0] sm:$0xff]
  %v57 = vld [vmem:[%s0 + $0xf8] sm:$0xff]
  %v58 = vld [vmem:[%s1] sm:$0xff]
  %v59 = vld [vmem:[%s1 + $0x8] sm:$0xff]
  %v60 = vld [vmem:[%s1 + $0x10] sm:$0xff]
  %v61 = vld [vmem:[%s1 + $0x18] sm:$0xff]
  %v62 = vld [vmem:[%s2] sm:$0x1]
  %v64 = vperm.slane %v62, 0
  %vm66 = vcmask 261120
  %v68 = vsel %vm66, %v26, 0
  %v71 = vsel %vm66, %v27, 0
  %v74 = vsel %vm66, %v28, 0
  %v77 = vsel %vm66, %v29, 0
  %v80 = vsel %vm66, %v30, 0
  %v83 = vsel %vm66, %v31, 0
  %v86 = vsel %vm66, %v32, 0
  %v89 = vsel %vm66, %v33, 0
  %v92 = vsel %vm66, %v34, 0
  %v95 = vsel %vm66, %v35, 0
  %v98 = vsel %vm66, %v36, 0
  %v101 = vsel %vm66, %v37, 0
  %v104 = vsel %vm66, %v38, 0
  %v107 = vsel %vm66, %v39, 0
  %v110 = vsel %vm66, %v40, 0
  %v113 = vsel %vm66, %v41, 0
  %v116 = vsel %vm66, %v42, 0
  %v119 = vsel %vm66, %v43, 0
  %v122 = vsel %vm66, %v44, 0
  %v125 = vsel %vm66, %v45, 0
  %v128 = vsel %vm66, %v46, 0
  %v131 = vsel %vm66, %v47, 0
  %v134 = vsel %vm66, %v48, 0
  %v137 = vsel %vm66, %v49, 0
  %v140 = vsel %vm66, %v50, 0
  %v143 = vsel %vm66, %v51, 0
  %v146 = vsel %vm66, %v52, 0
  %v149 = vsel %vm66, %v53, 0
  %v152 = vsel %vm66, %v54, 0
  %v155 = vsel %vm66, %v55, 0
  %v158 = vsel %vm66, %v56, 0
  %v161 = vsel %vm66, %v57, 0
  %163 = vmatpush.msra.mxu0 0.0
  %164 = vmatpush.msra.mxu0 0.0
  %165 = vmatpush.msra.mxu0 0.0
  %166 = vmatpush.msra.mxu0 0.0
  %167 = vmatpush.msra.mxu0 0.0
  %168 = vmatpush.msra.mxu0 0.0
  %169 = vmatpush.msra.mxu0 0.0
  %170 = vmatpush.msra.mxu0 0.0
  %171 = vmatpush.msra.mxu0 0.0
  %172 = vmatpush.msra.mxu0 0.0
  %173 = vmatpush.msra.mxu0 0.0
  %174 = vmatpush.msra.mxu0 0.0
  %175 = vmatpush.msra.mxu0 %v61
  %176 = vmatpush.msra.mxu0 %v60
  %177 = vmatpush.msra.mxu0 %v59
  %178 = vmatpush.msra.mxu0 %v58
  %179 = vmatmul.f32.gmra.mxu0 %v68
  %v180 = vpop.f32.mrf.mxu0
  %v181 = vadd.f32 %v64, %v180
  %182 = vmatmul.f32.gmra.mxu0 %v71
  %v183 = vpop.f32.mrf.mxu0
  %v184 = vadd.f32 %v64, %v183
  %185 = vmatmul.f32.gmra.mxu0 %v74
  %v186 = vpop.f32.mrf.mxu0
  %v187 = vadd.f32 %v64, %v186
  %188 = vmatmul.f32.gmra.mxu0 %v77
  %v189 = vpop.f32.mrf.mxu0
  %v190 = vadd.f32 %v64, %v189
  %191 = vmatmul.f32.gmra.mxu0 %v80
  %v192 = vpop.f32.mrf.mxu0
  %v193 = vadd.f32 %v64, %v192
  %194 = vmatmul.f32.gmra.mxu0 %v83
  %v195 = vpop.f32.mrf.mxu0
  %v196 = vadd.f32 %v64, %v195
  %197 = vmatmul.f32.gmra.mxu0 %v86
  %v198 = vpop.f32.mrf.mxu0
  %v199 = vadd.f32 %v64, %v198
  %200 = vmatmul.f32.gmra.mxu0 %v89
  %v201 = vpop.f32.mrf.mxu0
  %v202 = vadd.f32 %v64, %v201
  %203 = vmatmul.f32.gmra.mxu0 %v92
  %v204 = vpop.f32.mrf.mxu0
  %v205 = vadd.f32 %v64, %v204
  %206 = vmatmul.f32.gmra.mxu0 %v95
  %v207 = vpop.f32.mrf.mxu0
  %v208 = vadd.f32 %v64, %v207
  %209 = vmatmul.f32.gmra.mxu0 %v98
  %v210 = vpop.f32.mrf.mxu0
  %v211 = vadd.f32 %v64, %v210
  %212 = vmatmul.f32.gmra.mxu0 %v101
  %v213 = vpop.f32.mrf.mxu0
  %v214 = vadd.f32 %v64, %v213
  %215 = vmatmul.f32.gmra.mxu0 %v104
  %v216 = vpop.f32.mrf.mxu0
  %v217 = vadd.f32 %v64, %v216
  %218 = vmatmul.f32.gmra.mxu0 %v107
  %v219 = vpop.f32.mrf.mxu0
  %v220 = vadd.f32 %v64, %v219
  %221 = vmatmul.f32.gmra.mxu0 %v110
  %v222 = vpop.f32.mrf.mxu0
  %v223 = vadd.f32 %v64, %v222
  %224 = vmatmul.f32.gmra.mxu0 %v113
  %v225 = vpop.f32.mrf.mxu0
  %v226 = vadd.f32 %v64, %v225
  %227 = vmatmul.f32.gmra.mxu0 %v116
  %v228 = vpop.f32.mrf.mxu0
  %v229 = vadd.f32 %v64, %v228
  %230 = vmatmul.f32.gmra.mxu0 %v119
  %v231 = vpop.f32.mrf.mxu0
  %v232 = vadd.f32 %v64, %v231
  %233 = vmatmul.f32.gmra.mxu0 %v122
  %v234 = vpop.f32.mrf.mxu0
  %v235 = vadd.f32 %v64, %v234
  %236 = vmatmul.f32.gmra.mxu0 %v125
  %v237 = vpop.f32.mrf.mxu0
  %v238 = vadd.f32 %v64, %v237
  %239 = vmatmul.f32.gmra.mxu0 %v128
  %v240 = vpop.f32.mrf.mxu0
  %v241 = vadd.f32 %v64, %v240
  %242 = vmatmul.f32.gmra.mxu0 %v131
  %v243 = vpop.f32.mrf.mxu0
  %v244 = vadd.f32 %v64, %v243
  %245 = vmatmul.f32.gmra.mxu0 %v134
  %v246 = vpop.f32.mrf.mxu0
  %v247 = vadd.f32 %v64, %v246
  %248 = vmatmul.f32.gmra.mxu0 %v137
  %v249 = vpop.f32.mrf.mxu0
  %v250 = vadd.f32 %v64, %v249
  %251 = vmatmul.f32.gmra.mxu0 %v140
  %v252 = vpop.f32.mrf.mxu0
  %v253 = vadd.f32 %v64, %v252
  %254 = vmatmul.f32.gmra.mxu0 %v143
  %v255 = vpop.f32.mrf.mxu0
  %v256 = vadd.f32 %v64, %v255
  %257 = vmatmul.f32.gmra.mxu0 %v146
  %v258 = vpop.f32.mrf.mxu0
  %v259 = vadd.f32 %v64, %v258
  %260 = vmatmul.f32.gmra.mxu0 %v149
  %v261 = vpop.f32.mrf.mxu0
  %v262 = vadd.f32 %v64, %v261
  %263 = vmatmul.f32.gmra.mxu0 %v152
  %v264 = vpop.f32.mrf.mxu0
  %v265 = vadd.f32 %v64, %v264
  %266 = vmatmul.f32.gmra.mxu0 %v155
  %v267 = vpop.f32.mrf.mxu0
  %v268 = vadd.f32 %v64, %v267
  %269 = vmatmul.f32.gmra.mxu0 %v158
  %v270 = vpop.f32.mrf.mxu0
  %v271 = vadd.f32 %v64, %v270
  %272 = vmatmul.f32.gmra.mxu0 %v161
  %v273 = vpop.f32.mrf.mxu0
  %v274 = vadd.f32 %v64, %v273
  %275 = vdwg.mxu0
  %v276 = vmax.f32 %v181, 0.0
  %v277 = vmax.f32 %v184, 0.0
  %v278 = vmax.f32 %v187, 0.0
  %v279 = vmax.f32 %v190, 0.0
  %v280 = vmax.f32 %v193, 0.0
  %v281 = vmax.f32 %v196, 0.0
  %v282 = vmax.f32 %v199, 0.0
  %v283 = vmax.f32 %v202, 0.0
  %v284 = vmax.f32 %v205, 0.0
  %v285 = vmax.f32 %v208, 0.0
  %v286 = vmax.f32 %v211, 0.0
  %v287 = vmax.f32 %v214, 0.0
  %v288 = vmax.f32 %v217, 0.0
  %v289 = vmax.f32 %v220, 0.0
  %v290 = vmax.f32 %v223, 0.0
  %v291 = vmax.f32 %v226, 0.0
  %v292 = vmax.f32 %v229, 0.0
  %v293 = vmax.f32 %v232, 0.0
  %v294 = vmax.f32 %v235, 0.0
  %v295 = vmax.f32 %v238, 0.0
  %v296 = vmax.f32 %v241, 0.0
  %v297 = vmax.f32 %v244, 0.0
  %v298 = vmax.f32 %v247, 0.0
  %v299 = vmax.f32 %v250, 0.0
  %v300 = vmax.f32 %v253, 0.0
  %v301 = vmax.f32 %v256, 0.0
  %v302 = vmax.f32 %v259, 0.0
  %v303 = vmax.f32 %v262, 0.0
  %v304 = vmax.f32 %v265, 0.0
  %v305 = vmax.f32 %v268, 0.0
  %v306 = vmax.f32 %v271, 0.0
  %v307 = vmax.f32 %v274, 0.0
  %v308 = vld [vmem:[%s3] sm:$0xff]
  %v309 = vld [vmem:[%s3 + $0x8] sm:$0xff]
  %v310 = vld [vmem:[%s3 + $0x10] sm:$0xff]
  %v311 = vld [vmem:[%s3 + $0x18] sm:$0xff]
  %v312 = vld [vmem:[%s3 + $0x20] sm:$0xff]
  %v313 = vld [vmem:[%s3 + $0x28] sm:$0xff]
  %v314 = vld [vmem:[%s3 + $0x30] sm:$0xff]
  %v315 = vld [vmem:[%s3 + $0x38] sm:$0xff]
  %v316 = vld [vmem:[%s3 + $0x40] sm:$0xff]
  %v317 = vld [vmem:[%s3 + $0x48] sm:$0xff]
  %v318 = vld [vmem:[%s3 + $0x50] sm:$0xff]
  %v319 = vld [vmem:[%s3 + $0x58] sm:$0xff]
  %v320 = vld [vmem:[%s3 + $0x60] sm:$0xff]
  %v321 = vld [vmem:[%s3 + $0x68] sm:$0xff]
  %v322 = vld [vmem:[%s3 + $0x70] sm:$0xff]
  %v323 = vld [vmem:[%s3 + $0x78] sm:$0xff]
  %v324 = vld [vmem:[%s4] sm:$0x1]
  %v326 = vperm.slane %v324, 0
  %328 = vmatpush.msra.mxu0 %v323
  %329 = vmatpush.msra.mxu0 %v322
  %330 = vmatpush.msra.mxu0 %v321
  %331 = vmatpush.msra.mxu0 %v320
  %332 = vmatpush.msra.mxu0 %v319
  %333 = vmatpush.msra.mxu0 %v318
  %334 = vmatpush.msra.mxu0 %v317
  %335 = vmatpush.msra.mxu0 %v316
  %336 = vmatpush.msra.mxu0 %v315
  %337 = vmatpush.msra.mxu0 %v314
  %338 = vmatpush.msra.mxu0 %v313
  %339 = vmatpush.msra.mxu0 %v312
  %340 = vmatpush.msra.mxu0 %v311
  %341 = vmatpush.msra.mxu0 %v310
  %342 = vmatpush.msra.mxu0 %v309
  %343 = vmatpush.msra.mxu0 %v308
  %344 = vmatmul.f32.gmra.mxu0 %v276
  %v345 = vpop.f32.mrf.mxu0
  %v346 = vadd.f32 %v326, %v345
  %347 = vmatmul.f32.gmra.mxu0 %v277
  %v348 = vpop.f32.mrf.mxu0
  %v349 = vadd.f32 %v326, %v348
  %350 = vmatmul.f32.gmra.mxu0 %v278
  %v351 = vpop.f32.mrf.mxu0
  %v352 = vadd.f32 %v326, %v351
  %353 = vmatmul.f32.gmra.mxu0 %v279
  %v354 = vpop.f32.mrf.mxu0
  %v355 = vadd.f32 %v326, %v354
  %356 = vmatmul.f32.gmra.mxu0 %v280
  %v357 = vpop.f32.mrf.mxu0
  %v358 = vadd.f32 %v326, %v357
  %359 = vmatmul.f32.gmra.mxu0 %v281
  %v360 = vpop.f32.mrf.mxu0
  %v361 = vadd.f32 %v326, %v360
  %362 = vmatmul.f32.gmra.mxu0 %v282
  %v363 = vpop.f32.mrf.mxu0
  %v364 = vadd.f32 %v326, %v363
  %365 = vmatmul.f32.gmra.mxu0 %v283
  %v366 = vpop.f32.mrf.mxu0
  %v367 = vadd.f32 %v326, %v366
  %368 = vmatmul.f32.gmra.mxu0 %v284
  %v369 = vpop.f32.mrf.mxu0
  %v370 = vadd.f32 %v326, %v369
  %371 = vmatmul.f32.gmra.mxu0 %v285
  %v372 = vpop.f32.mrf.mxu0
  %v373 = vadd.f32 %v326, %v372
  %374 = vmatmul.f32.gmra.mxu0 %v286
  %v375 = vpop.f32.mrf.mxu0
  %v376 = vadd.f32 %v326, %v375
  %377 = vmatmul.f32.gmra.mxu0 %v287
  %v378 = vpop.f32.mrf.mxu0
  %v379 = vadd.f32 %v326, %v378
  %380 = vmatmul.f32.gmra.mxu0 %v288
  %v381 = vpop.f32.mrf.mxu0
  %v382 = vadd.f32 %v326, %v381
  %383 = vmatmul.f32.gmra.mxu0 %v289
  %v384 = vpop.f32.mrf.mxu0
  %v385 = vadd.f32 %v326, %v384
  %386 = vmatmul.f32.gmra.mxu0 %v290
  %v387 = vpop.f32.mrf.mxu0
  %v388 = vadd.f32 %v326, %v387
  %389 = vmatmul.f32.gmra.mxu0 %v291
  %v390 = vpop.f32.mrf.mxu0
  %v391 = vadd.f32 %v326, %v390
  %392 = vmatmul.f32.gmra.mxu0 %v292
  %v393 = vpop.f32.mrf.mxu0
  %v394 = vadd.f32 %v326, %v393
  %395 = vmatmul.f32.gmra.mxu0 %v293
  %v396 = vpop.f32.mrf.mxu0
  %v397 = vadd.f32 %v326, %v396
  %398 = vmatmul.f32.gmra.mxu0 %v294
  %v399 = vpop.f32.mrf.mxu0
  %v400 = vadd.f32 %v326, %v399
  %401 = vmatmul.f32.gmra.mxu0 %v295
  %v402 = vpop.f32.mrf.mxu0
  %v403 = vadd.f32 %v326, %v402
  %404 = vmatmul.f32.gmra.mxu0 %v296
  %v405 = vpop.f32.mrf.mxu0
  %v406 = vadd.f32 %v326, %v405
  %407 = vmatmul.f32.gmra.mxu0 %v297
  %v408 = vpop.f32.mrf.mxu0
  %v409 = vadd.f32 %v326, %v408
  %410 = vmatmul.f32.gmra.mxu0 %v298
  %v411 = vpop.f32.mrf.mxu0
  %v412 = vadd.f32 %v326, %v411
  %413 = vmatmul.f32.gmra.mxu0 %v299
  %v414 = vpop.f32.mrf.mxu0
  %v415 = vadd.f32 %v326, %v414
  %416 = vmatmul.f32.gmra.mxu0 %v300
  %v417 = vpop.f32.mrf.mxu0
  %v418 = vadd.f32 %v326, %v417
  %419 = vmatmul.f32.gmra.mxu0 %v301
  %v420 = vpop.f32.mrf.mxu0
  %v421 = vadd.f32 %v326, %v420
  %422 = vmatmul.f32.gmra.mxu0 %v302
  %v423 = vpop.f32.mrf.mxu0
  %v424 = vadd.f32 %v326, %v423
  %425 = vmatmul.f32.gmra.mxu0 %v303
  %v426 = vpop.f32.mrf.mxu0
  %v427 = vadd.f32 %v326, %v426
  %428 = vmatmul.f32.gmra.mxu0 %v304
  %v429 = vpop.f32.mrf.mxu0
  %v430 = vadd.f32 %v326, %v429
  %431 = vmatmul.f32.gmra.mxu0 %v305
  %v432 = vpop.f32.mrf.mxu0
  %v433 = vadd.f32 %v326, %v432
  %434 = vmatmul.f32.gmra.mxu0 %v306
  %v435 = vpop.f32.mrf.mxu0
  %v436 = vadd.f32 %v326, %v435
  %437 = vmatmul.f32.gmra.mxu0 %v307
  %v438 = vpop.f32.mrf.mxu0
  %v439 = vadd.f32 %v326, %v438
  %440 = vdwg.mxu0
  %v441 = vmax.f32 %v346, 0.0
  %v442 = vmax.f32 %v349, 0.0
  %v443 = vmax.f32 %v352, 0.0
  %v444 = vmax.f32 %v355, 0.0
  %v445 = vmax.f32 %v358, 0.0
  %v446 = vmax.f32 %v361, 0.0
  %v447 = vmax.f32 %v364, 0.0
  %v448 = vmax.f32 %v367, 0.0
  %v449 = vmax.f32 %v370, 0.0
  %v450 = vmax.f32 %v373, 0.0
  %v451 = vmax.f32 %v376, 0.0
  %v452 = vmax.f32 %v379, 0.0
  %v453 = vmax.f32 %v382, 0.0
  %v454 = vmax.f32 %v385, 0.0
  %v455 = vmax.f32 %v388, 0.0
  %v456 = vmax.f32 %v391, 0.0
  %v457 = vmax.f32 %v394, 0.0
  %v458 = vmax.f32 %v397, 0.0
  %v459 = vmax.f32 %v400, 0.0
  %v460 = vmax.f32 %v403, 0.0
  %v461 = vmax.f32 %v406, 0.0
  %v462 = vmax.f32 %v409, 0.0
  %v463 = vmax.f32 %v412, 0.0
  %v464 = vmax.f32 %v415, 0.0
  %v465 = vmax.f32 %v418, 0.0
  %v466 = vmax.f32 %v421, 0.0
  %v467 = vmax.f32 %v424, 0.0
  %v468 = vmax.f32 %v427, 0.0
  %v469 = vmax.f32 %v430, 0.0
  %v470 = vmax.f32 %v433, 0.0
  %v471 = vmax.f32 %v436, 0.0
  %v472 = vmax.f32 %v439, 0.0
  %v473 = vld [vmem:[%s5] sm:$0xff]
  %v474 = vld [vmem:[%s5 + $0x8] sm:$0xff]
  %v475 = vld [vmem:[%s5 + $0x10] sm:$0xff]
  %v476 = vld [vmem:[%s5 + $0x18] sm:$0xff]
  %v477 = vld [vmem:[%s5 + $0x20] sm:$0xff]
  %v478 = vld [vmem:[%s5 + $0x28] sm:$0xff]
  %v479 = vld [vmem:[%s5 + $0x30] sm:$0xff]
  %v480 = vld [vmem:[%s5 + $0x38] sm:$0xff]
  %v481 = vld [vmem:[%s5 + $0x40] sm:$0xff]
  %v482 = vld [vmem:[%s5 + $0x48] sm:$0xff]
  %v483 = vld [vmem:[%s5 + $0x50] sm:$0xff]
  %v484 = vld [vmem:[%s5 + $0x58] sm:$0xff]
  %v485 = vld [vmem:[%s5 + $0x60] sm:$0xff]
  %v486 = vld [vmem:[%s5 + $0x68] sm:$0xff]
  %v487 = vld [vmem:[%s5 + $0x70] sm:$0xff]
  %v488 = vld [vmem:[%s5 + $0x78] sm:$0xff]
  %v489 = vld [vmem:[%s6] sm:$0x1]
  %v491 = vperm.slane %v489, 0
  %493 = vmatpush.msra.mxu0 %v488
  %494 = vmatpush.msra.mxu0 %v487
  %495 = vmatpush.msra.mxu0 %v486
  %496 = vmatpush.msra.mxu0 %v485
  %497 = vmatpush.msra.mxu0 %v484
  %498 = vmatpush.msra.mxu0 %v483
  %499 = vmatpush.msra.mxu0 %v482
  %500 = vmatpush.msra.mxu0 %v481
  %501 = vmatpush.msra.mxu0 %v480
  %502 = vmatpush.msra.mxu0 %v479
  %503 = vmatpush.msra.mxu0 %v478
  %504 = vmatpush.msra.mxu0 %v477
  %505 = vmatpush.msra.mxu0 %v476
  %506 = vmatpush.msra.mxu0 %v475
  %507 = vmatpush.msra.mxu0 %v474
  %508 = vmatpush.msra.mxu0 %v473
  %509 = vmatmul.f32.gmra.mxu0 %v441
  %v510 = vpop.f32.mrf.mxu0
  %v511 = vadd.f32 %v491, %v510
  %512 = vmatmul.f32.gmra.mxu0 %v442
  %v513 = vpop.f32.mrf.mxu0
  %v514 = vadd.f32 %v491, %v513
  %515 = vmatmul.f32.gmra.mxu0 %v443
  %v516 = vpop.f32.mrf.mxu0
  %v517 = vadd.f32 %v491, %v516
  %518 = vmatmul.f32.gmra.mxu0 %v444
  %v519 = vpop.f32.mrf.mxu0
  %v520 = vadd.f32 %v491, %v519
  %521 = vmatmul.f32.gmra.mxu0 %v445
  %v522 = vpop.f32.mrf.mxu0
  %v523 = vadd.f32 %v491, %v522
  %524 = vmatmul.f32.gmra.mxu0 %v446
  %v525 = vpop.f32.mrf.mxu0
  %v526 = vadd.f32 %v491, %v525
  %527 = vmatmul.f32.gmra.mxu0 %v447
  %v528 = vpop.f32.mrf.mxu0
  %v529 = vadd.f32 %v491, %v528
  %530 = vmatmul.f32.gmra.mxu0 %v448
  %v531 = vpop.f32.mrf.mxu0
  %v532 = vadd.f32 %v491, %v531
  %533 = vmatmul.f32.gmra.mxu0 %v449
  %v534 = vpop.f32.mrf.mxu0
  %v535 = vadd.f32 %v491, %v534
  %536 = vmatmul.f32.gmra.mxu0 %v450
  %v537 = vpop.f32.mrf.mxu0
  %v538 = vadd.f32 %v491, %v537
  %539 = vmatmul.f32.gmra.mxu0 %v451
  %v540 = vpop.f32.mrf.mxu0
  %v541 = vadd.f32 %v491, %v540
  %542 = vmatmul.f32.gmra.mxu0 %v452
  %v543 = vpop.f32.mrf.mxu0
  %v544 = vadd.f32 %v491, %v543
  %545 = vmatmul.f32.gmra.mxu0 %v453
  %v546 = vpop.f32.mrf.mxu0
  %v547 = vadd.f32 %v491, %v546
  %548 = vmatmul.f32.gmra.mxu0 %v454
  %v549 = vpop.f32.mrf.mxu0
  %v550 = vadd.f32 %v491, %v549
  %551 = vmatmul.f32.gmra.mxu0 %v455
  %v552 = vpop.f32.mrf.mxu0
  %v553 = vadd.f32 %v491, %v552
  %554 = vmatmul.f32.gmra.mxu0 %v456
  %v555 = vpop.f32.mrf.mxu0
  %v556 = vadd.f32 %v491, %v555
  %557 = vmatmul.f32.gmra.mxu0 %v457
  %v558 = vpop.f32.mrf.mxu0
  %v559 = vadd.f32 %v491, %v558
  %560 = vmatmul.f32.gmra.mxu0 %v458
  %v561 = vpop.f32.mrf.mxu0
  %v562 = vadd.f32 %v491, %v561
  %563 = vmatmul.f32.gmra.mxu0 %v459
  %v564 = vpop.f32.mrf.mxu0
  %v565 = vadd.f32 %v491, %v564
  %566 = vmatmul.f32.gmra.mxu0 %v460
  %v567 = vpop.f32.mrf.mxu0
  %v568 = vadd.f32 %v491, %v567
  %569 = vmatmul.f32.gmra.mxu0 %v461
  %v570 = vpop.f32.mrf.mxu0
  %v571 = vadd.f32 %v491, %v570
  %572 = vmatmul.f32.gmra.mxu0 %v462
  %v573 = vpop.f32.mrf.mxu0
  %v574 = vadd.f32 %v491, %v573
  %575 = vmatmul.f32.gmra.mxu0 %v463
  %v576 = vpop.f32.mrf.mxu0
  %v577 = vadd.f32 %v491, %v576
  %578 = vmatmul.f32.gmra.mxu0 %v464
  %v579 = vpop.f32.mrf.mxu0
  %v580 = vadd.f32 %v491, %v579
  %581 = vmatmul.f32.gmra.mxu0 %v465
  %v582 = vpop.f32.mrf.mxu0
  %v583 = vadd.f32 %v491, %v582
  %584 = vmatmul.f32.gmra.mxu0 %v466
  %v585 = vpop.f32.mrf.mxu0
  %v586 = vadd.f32 %v491, %v585
  %587 = vmatmul.f32.gmra.mxu0 %v467
  %v588 = vpop.f32.mrf.mxu0
  %v589 = vadd.f32 %v491, %v588
  %590 = vmatmul.f32.gmra.mxu0 %v468
  %v591 = vpop.f32.mrf.mxu0
  %v592 = vadd.f32 %v491, %v591
  %593 = vmatmul.f32.gmra.mxu0 %v469
  %v594 = vpop.f32.mrf.mxu0
  %v595 = vadd.f32 %v491, %v594
  %596 = vmatmul.f32.gmra.mxu0 %v470
  %v597 = vpop.f32.mrf.mxu0
  %v598 = vadd.f32 %v491, %v597
  %599 = vmatmul.f32.gmra.mxu0 %v471
  %v600 = vpop.f32.mrf.mxu0
  %v601 = vadd.f32 %v491, %v600
  %602 = vmatmul.f32.gmra.mxu0 %v472
  %v603 = vpop.f32.mrf.mxu0
  %v604 = vadd.f32 %v491, %v603
  %605 = vdwg.mxu0
  %vm606 = vcmask 130048
  %607 = vst.msk [vmem:[%s7] sm:$0xff] %vm606, %v511
  %608 = vst.msk [vmem:[%s7 + $0x8] sm:$0xff] %vm606, %v514
  %609 = vst.msk [vmem:[%s7 + $0x10] sm:$0xff] %vm606, %v517
  %610 = vst.msk [vmem:[%s7 + $0x18] sm:$0xff] %vm606, %v520
  %611 = vst.msk [vmem:[%s7 + $0x20] sm:$0xff] %vm606, %v523
  %612 = vst.msk [vmem:[%s7 + $0x28] sm:$0xff] %vm606, %v526
  %613 = vst.msk [vmem:[%s7 + $0x30] sm:$0xff] %vm606, %v529
  %614 = vst.msk [vmem:[%s7 + $0x38] sm:$0xff] %vm606, %v532
  %615 = vst.msk [vmem:[%s7 + $0x40] sm:$0xff] %vm606, %v535
  %616 = vst.msk [vmem:[%s7 + $0x48] sm:$0xff] %vm606, %v538
  %617 = vst.msk [vmem:[%s7 + $0x50] sm:$0xff] %vm606, %v541
  %618 = vst.msk [vmem:[%s7 + $0x58] sm:$0xff] %vm606, %v544
  %619 = vst.msk [vmem:[%s7 + $0x60] sm:$0xff] %vm606, %v547
  %620 = vst.msk [vmem:[%s7 + $0x68] sm:$0xff] %vm606, %v550
  %621 = vst.msk [vmem:[%s7 + $0x70] sm:$0xff] %vm606, %v553
  %622 = vst.msk [vmem:[%s7 + $0x78] sm:$0xff] %vm606, %v556
  %623 = vst.msk [vmem:[%s7 + $0x80] sm:$0xff] %vm606, %v559
  %624 = vst.msk [vmem:[%s7 + $0x88] sm:$0xff] %vm606, %v562
  %625 = vst.msk [vmem:[%s7 + $0x90] sm:$0xff] %vm606, %v565
  %626 = vst.msk [vmem:[%s7 + $0x98] sm:$0xff] %vm606, %v568
  %627 = vst.msk [vmem:[%s7 + $0xa0] sm:$0xff] %vm606, %v571
  %628 = vst.msk [vmem:[%s7 + $0xa8] sm:$0xff] %vm606, %v574
  %629 = vst.msk [vmem:[%s7 + $0xb0] sm:$0xff] %vm606, %v577
  %630 = vst.msk [vmem:[%s7 + $0xb8] sm:$0xff] %vm606, %v580
  %631 = vst.msk [vmem:[%s7 + $0xc0] sm:$0xff] %vm606, %v583
  %632 = vst.msk [vmem:[%s7 + $0xc8] sm:$0xff] %vm606, %v586
  %633 = vst.msk [vmem:[%s7 + $0xd0] sm:$0xff] %vm606, %v589
  %634 = vst.msk [vmem:[%s7 + $0xd8] sm:$0xff] %vm606, %v592
  %635 = vst.msk [vmem:[%s7 + $0xe0] sm:$0xff] %vm606, %v595
  %636 = vst.msk [vmem:[%s7 + $0xe8] sm:$0xff] %vm606, %v598
  %637 = vst.msk [vmem:[%s7 + $0xf0] sm:$0xff] %vm606, %v601
  %638 = vst.msk [vmem:[%s7 + $0xf8] sm:$0xff] %vm606, %v604
  // Predicated region
  $region30: #{tpu_custom_call.1} parent=0 // pred_check
    _
  $region31: #{tpu_custom_call.1} parent=0 // pred_check_branch
    %640 = sbr.rel (0) target = $region33
  $region32: #{tpu_custom_call.1} parent=0 // pred_region
    _
  $region33: #{tpu_custom_call.1} parent=0 // pred_fallthru
    _
  // Predicated region
  $region34: #{tpu_custom_call.1} parent=0 // pred_check
    _
  $region35: #{tpu_custom_call.1} parent=0 // pred_check_branch
    %642 = sbr.rel (0) target = $region37
  $region36: #{tpu_custom_call.1} parent=0 // pred_region
    _
  $region37: #{tpu_custom_call.1} parent=0 // pred_fallthru
    _

</llo_original>
